<compile_context>
chip_gen: v5e
topology: v5e:2x2
jax: 0.10.0
libtpu: 0.0.40
codegen_flags: <defaults>
</compile_context>

<pallas_src>
import functools
import math

import jax
import jax.numpy as jnp
from jax import lax
from jax.experimental import pallas as pl
from jax.experimental.pallas import tpu as pltpu


def _round_up(x: int, m: int) -> int:
    return ((x + m - 1) // m) * m


# ------------------------- Pallas kernel (hot path) -------------------------

def _fused_embed_proj_kernel(label_ref, box_ref, ltab_ref, btab_ref, o_ref, *,
                             bbox_vocab: int):
    """o = one_hot(label) @ ltab + multi_hot(box) @ btab (bias folded in ltab).

    label_ref: (tm, 1)  int32
    box_ref:   (tm, 4)  int32
    ltab_ref:  (Lp, Dm) bf16   -- VMEM-resident label table (+ bias)
    btab_ref:  (Bp, Dm) bf16   -- VMEM-resident box table (4 segments)
    o_ref:     (tm, Dm) f32/bf16
    """
    tm = label_ref.shape[0]
    Lp = ltab_ref.shape[0]
    Bp = btab_ref.shape[0]
    tdt = ltab_ref.dtype

    # --- label half: single compare over (tm, Lp), single cast ---
    iota_l = lax.broadcasted_iota(jnp.int32, (tm, Lp), 1)
    hot_l = (iota_l == label_ref[...]).astype(tdt)            # (tm, Lp)

    # --- box half: 4 bool compares OR'd, one cast at the end ---
    iota_b = lax.broadcasted_iota(jnp.int32, (tm, Bp), 1)
    box = box_ref[...]                                         # (tm, 4) int32
    hits = iota_b == box[:, 0:1]
    for j in range(1, 4):
        # segment j of the box table starts at row j*bbox_vocab
        hits = jnp.logical_or(hits, iota_b == (box[:, j:j + 1] + j * bbox_vocab))
    hot_b = hits.astype(tdt)                                   # (tm, Bp)

    # Two K=128 bf16 MXU matmuls accumulated in f32 (no K grid axis, no scratch).
    acc = jnp.dot(hot_l, ltab_ref[...], preferred_element_type=jnp.float32)
    acc = acc + jnp.dot(hot_b, btab_ref[...], preferred_element_type=jnp.float32)
    o_ref[...] = acc.astype(o_ref.dtype)


def layout_embed_proj_pallas(label_ids, box_ids, label_table, box_table, *,
                             bbox_vocab, tm=1024, out_dtype=jnp.float32):
    """label_ids: (M,1) int32, box_ids: (M,4) int32,
    label_table: (Lp, Dm) bf16, box_table: (Bp, Dm) bf16 -> (M, Dm) out_dtype."""
    M = label_ids.shape[0]
    Lp, Dm = label_table.shape
    Bp, _ = box_table.shape
    assert Lp % 128 == 0 and Bp % 128 == 0, (Lp, Bp)
    tbl_itemsize = jnp.dtype(label_table.dtype).itemsize
    out_itemsize = jnp.dtype(out_dtype).itemsize

    # Row tile: big (amortize per-step overhead), shrunk to stay under a
    # conservative VMEM budget (safe on v7x's 64 MiB / 32 MiB scoped default).
    tm_eff = min(tm, _round_up(M, 8))
    tbl_bytes = (Lp + Bp) * Dm * tbl_itemsize

    def _est(t):
        io = 2 * t * (Dm * out_itemsize + 5 * 4)          # dbl-buffered out + id tiles
        scratch = t * ((Lp + Bp) * 6 + Dm * 4)            # iota/bool/bf16 selectors + f32 acc
        return tbl_bytes + io + scratch

    budget = 16 << 20
    while tm_eff > 8 and _est(tm_eff) > budget:
        tm_eff = max(8, (tm_eff // 2 + 7) // 8 * 8)

    # Pad M up to the tile so arbitrary S*N works; padded rows sliced off below.
    M_pad = _round_up(M, tm_eff)
    if M_pad != M:
        pad = M_pad - M
        label_ids = jnp.pad(label_ids, ((0, pad), (0, 0)))
        box_ids = jnp.pad(box_ids, ((0, pad), (0, 0)))

    kernel = functools.partial(_fused_embed_proj_kernel, bbox_vocab=bbox_vocab)
    out = pl.pallas_call(
        kernel,
        out_shape=jax.ShapeDtypeStruct((M_pad, Dm), out_dtype),
        grid_spec=pltpu.PrefetchScalarGridSpec(
            num_scalar_prefetch=0,
            grid=(M_pad // tm_eff,),
            in_specs=[
                pl.BlockSpec((tm_eff, 1), lambda i: (i, 0)),    # label ids tile
                pl.BlockSpec((tm_eff, 4), lambda i: (i, 0)),    # box ids tile
                pl.BlockSpec((Lp, Dm), lambda i: (0, 0)),       # resident label table
                pl.BlockSpec((Bp, Dm), lambda i: (0, 0)),       # resident box table
            ],
            out_specs=pl.BlockSpec((tm_eff, Dm), lambda i: (i, 0)),
        ),
        compiler_params=pltpu.CompilerParams(
            dimension_semantics=("parallel",),
            vmem_limit_bytes=32 << 20),
    )(label_ids, box_ids, label_table, box_table)
    return out[:M]


# -------------------------- Module (params + glue) ---------------------------

class LayoutEmbedding:
    """JAX port of coarse2fine LayoutEmbedding. Parameters init'd in-script."""

    EMB = 128  # embedding width used by both tables (as in the PyTorch module)

    def __init__(self, num_labels, discrete_x_grid, discrete_y_grid, d_model, key):
        self.d_model = d_model
        self.label_vocab = num_labels + 3
        self.bbox_vocab = max(discrete_x_grid, discrete_y_grid)
        k0, k1, k2, k3, k4, k5 = jax.random.split(key, 6)

        # kaiming_normal_(mode='fan_in') -> std = sqrt(2 / fan_in)
        self.label_w = (jax.random.normal(k0, (self.label_vocab, self.EMB), jnp.float32)
                        * math.sqrt(2.0 / self.EMB))
        self.bbox_w = (jax.random.normal(k1, (self.bbox_vocab, self.EMB), jnp.float32)
                       * math.sqrt(2.0 / self.EMB))

        in_features = self.EMB * 5
        # PyTorch Linear weight is (out, in); store transposed for x @ W^T.
        proj_w = (jax.random.normal(k2, (d_model, in_features), jnp.float32)
                  * math.sqrt(2.0 / in_features))
        self.proj_w_t = proj_w.T                                   # (640, d_model)
        bound = 1.0 / math.sqrt(in_features)
        self.proj_b = jax.random.uniform(k3, (d_model,), jnp.float32,
                                         minval=-bound, maxval=bound)

        # group_label_embed exists in __init__ but is unused in forward();
        # params created for parity only.
        gl_in = num_labels + 2
        gl_bound = 1.0 / math.sqrt(gl_in)
        self.group_label_w = jax.random.uniform(
            k4, (self.EMB, gl_in), jnp.float32, minval=-gl_bound, maxval=gl_bound)
        self.group_label_b = jax.random.uniform(
            k5, (self.EMB,), jnp.float32, minval=-gl_bound, maxval=gl_bound)

        # ---- Fused projected tables (inference-time precompute) ----
        # Fold proj_cat into the (tiny) embedding tables; bias goes on the
        # label rows since every output row picks exactly one label row.
        # Per-segment padding: label table padded to 128-row multiple, the 4
        # box sub-tables are contiguous and padded together -> two K=128
        # compare halves in the kernel.
        hi = jax.lax.Precision.HIGHEST
        W = self.proj_w_t                                          # (640, d_model)
        label_proj = jnp.dot(self.label_w, W[0:self.EMB], precision=hi) + self.proj_b
        Lp = _round_up(self.label_vocab, 128)
        label_proj = jnp.pad(label_proj, ((0, Lp - self.label_vocab), (0, 0)))
        box_projs = [
            jnp.dot(self.bbox_w, W[self.EMB * (i + 1):self.EMB * (i + 2)], precision=hi)
            for i in range(4)
        ]
        box_proj = jnp.concatenate(box_projs, axis=0)              # (4*bbox_vocab, d_model)
        Bsz = 4 * self.bbox_vocab
        Bp = _round_up(Bsz, 128)
        box_proj = jnp.pad(box_proj, ((0, Bp - Bsz), (0, 0)))
        self.label_table = label_proj.astype(jnp.bfloat16)         # (Lp, d_model) bf16
        self.box_table = box_proj.astype(jnp.bfloat16)             # (Bp, d_model) bf16

    # ---- API-parity helpers (plain JAX, not on the fused hot path) ----
    def get_label_embedding(self, label):
        return jnp.take(self.label_w, label, axis=0)               # (S, N, 128)

    def get_box_embedding(self, box):
        bbox_vecs = jnp.take(self.bbox_w, box, axis=0)             # (S, N, 4, 128)
        S, N, _, E = bbox_vecs.shape
        return bbox_vecs.reshape(S, N, 4 * E)                      # (S, N, 512)

    def get_group_label_embedding(self, label_onehot):
        # TODO(synk): not part of forward(); plain JAX linear kept for API parity.
        return label_onehot @ self.group_label_w.T + self.group_label_b

    # ---- forward: 5 fused gathers + projection inside one Pallas kernel ----
    def forward(self, label, box):
        S, N = label.shape
        label_ids = label.reshape(S * N, 1).astype(jnp.int32)      # (M, 1)
        box_ids = box.reshape(S * N, 4).astype(jnp.int32)          # (M, 4)
        out = layout_embed_proj_pallas(
            label_ids, box_ids, self.label_table, self.box_table,
            bbox_vocab=self.bbox_vocab, out_dtype=jnp.float32)     # (M, d_model)
        return out.reshape(S, N, self.d_model)


# ----------------------------------- main ------------------------------------

if __name__ == "__main__":
    # small cfg
    num_labels = 10
    discrete_x_grid = 32
    discrete_y_grid = 32
    d_model = 256
    S, N = 8, 2   # seq, batch (sequence-first, like the PyTorch usage)

    key = jax.random.PRNGKey(0)
    kp, kl, kb = jax.random.split(key, 3)

    model = LayoutEmbedding(num_labels, discrete_x_grid, discrete_y_grid,
                            d_model, kp)

    label = jax.random.randint(kl, (S, N), 0, num_labels + 3, dtype=jnp.int32)
    box = jax.random.randint(kb, (S, N, 4), 0,
                             max(discrete_x_grid, discrete_y_grid),
                             dtype=jnp.int32)

    src = model.forward(label, box)
    src = jax.block_until_ready(src)
    assert src.shape == (S, N, d_model), src.shape

    # Reference check against the ORIGINAL factorization in plain JAX (f32).
    lv = jnp.take(model.label_w, label, axis=0)
    bv = jnp.take(model.bbox_w, box, axis=0).reshape(S, N, -1)
    ref = jnp.concatenate([lv, bv], -1).reshape(S * N, -1) @ model.proj_w_t
    ref = (ref + model.proj_b).reshape(S, N, d_model)
    # bf16 table operands -> loosened tolerance (expected, per review).
    max_diff = float(jnp.max(jnp.abs(src - ref)))
    assert jnp.allclose(src, ref, atol=2e-2, rtol=2e-2), f"max|diff|={max_diff}"

    print("KERNEL_OK")
</pallas_src>

<mosaic_0001>
module attributes {stable_mosaic.version = 11 : i64} {
  func.func @_fused_embed_proj_kernel(%arg0: i32, %arg1: memref<16x1xi32, #tpu.memory_space<vmem>>, %arg2: memref<16x4xi32, #tpu.memory_space<vmem>>, %arg3: memref<128x256xbf16, #tpu.memory_space<vmem>>, %arg4: memref<128x256xbf16, #tpu.memory_space<vmem>>, %arg5: memref<16x256xf32, #tpu.memory_space<vmem>>) attributes {dimension_semantics = [#tpu.dimension_semantics<parallel>], iteration_bounds = array<i64: 1>, scalar_prefetch = 0 : i64, scratch_operands = 0 : i64, tpu.core_type = #tpu.core_type<tc>, window_params = [{transform_indices = @transform_0, window_bounds = array<i64: 16, 1>}, {transform_indices = @transform_1, window_bounds = array<i64: 16, 4>}, {pipeline_mode = #tpu.pipeline_mode<synchronous>, transform_indices = @transform_2, window_bounds = array<i64: 128, 256>}, {pipeline_mode = #tpu.pipeline_mode<synchronous>, transform_indices = @transform_3, window_bounds = array<i64: 128, 256>}, {transform_indices = @transform_4, window_bounds = array<i64: 16, 256>}]} {
    %0 = tpu.iota {dimensions = array<i32: 1>} : vector<16x128xi32>
    %c0 = arith.constant 0 : index
    %c0_0 = arith.constant 0 : index
    %1 = vector.load %arg1[%c0, %c0_0] : memref<16x1xi32, #tpu.memory_space<vmem>>, vector<16x1xi32>
    %2 = vector.broadcast %1 : vector<16x1xi32> to vector<16x128xi32>
    %3 = arith.cmpi eq, %0, %2 : vector<16x128xi32>
    %4 = arith.extui %3 : vector<16x128xi1> to vector<16x128xi32>
    %5 = arith.sitofp %4 : vector<16x128xi32> to vector<16x128xf32>
    %6 = arith.truncf %5 : vector<16x128xf32> to vector<16x128xbf16>
    %7 = tpu.iota {dimensions = array<i32: 1>} : vector<16x128xi32>
    %c0_1 = arith.constant 0 : index
    %c0_2 = arith.constant 0 : index
    %8 = vector.load %arg2[%c0_1, %c0_2] : memref<16x4xi32, #tpu.memory_space<vmem>>, vector<16x4xi32>
    %9 = vector.extract_strided_slice %8 {offsets = [0, 0], sizes = [16, 1], strides = [1, 1]} : vector<16x4xi32> to vector<16x1xi32>
    %10 = vector.broadcast %9 : vector<16x1xi32> to vector<16x128xi32>
    %11 = arith.cmpi eq, %7, %10 : vector<16x128xi32>
    %12 = vector.extract_strided_slice %8 {offsets = [0, 1], sizes = [16, 1], strides = [1, 1]} : vector<16x4xi32> to vector<16x1xi32>
    %c32_i32 = arith.constant 32 : i32
    %13 = vector.broadcast %c32_i32 : i32 to vector<16x1xi32>
    %14 = arith.addi %12, %13 : vector<16x1xi32>
    %15 = vector.broadcast %14 : vector<16x1xi32> to vector<16x128xi32>
    %16 = arith.cmpi eq, %7, %15 : vector<16x128xi32>
    %17 = arith.ori %11, %16 : vector<16x128xi1>
    %18 = vector.extract_strided_slice %8 {offsets = [0, 2], sizes = [16, 1], strides = [1, 1]} : vector<16x4xi32> to vector<16x1xi32>
    %c64_i32 = arith.constant 64 : i32
    %19 = vector.broadcast %c64_i32 : i32 to vector<16x1xi32>
    %20 = arith.addi %18, %19 : vector<16x1xi32>
    %21 = vector.broadcast %20 : vector<16x1xi32> to vector<16x128xi32>
    %22 = arith.cmpi eq, %7, %21 : vector<16x128xi32>
    %23 = arith.ori %17, %22 : vector<16x128xi1>
    %24 = vector.extract_strided_slice %8 {offsets = [0, 3], sizes = [16, 1], strides = [1, 1]} : vector<16x4xi32> to vector<16x1xi32>
    %c96_i32 = arith.constant 96 : i32
    %25 = vector.broadcast %c96_i32 : i32 to vector<16x1xi32>
    %26 = arith.addi %24, %25 : vector<16x1xi32>
    %27 = vector.broadcast %26 : vector<16x1xi32> to vector<16x128xi32>
    %28 = arith.cmpi eq, %7, %27 : vector<16x128xi32>
    %29 = arith.ori %23, %28 : vector<16x128xi1>
    %30 = arith.extui %29 : vector<16x128xi1> to vector<16x128xi32>
    %31 = arith.sitofp %30 : vector<16x128xi32> to vector<16x128xf32>
    %32 = arith.truncf %31 : vector<16x128xf32> to vector<16x128xbf16>
    %c0_3 = arith.constant 0 : index
    %c0_4 = arith.constant 0 : index
    %33 = vector.load %arg3[%c0_3, %c0_4] : memref<128x256xbf16, #tpu.memory_space<vmem>>, vector<128x256xbf16>
    %cst = arith.constant dense<0.000000e+00> : vector<16x256xf32>
    %34 = tpu.matmul %6, %33, %cst {dimension_numbers = #tpu.dot_dimension_numbers<[1], [0], [0], [1], [0, 0, 1, 1], [], []>} : vector<16x128xbf16>, vector<128x256xbf16>, vector<16x256xf32> -> vector<16x256xf32>
    %c0_5 = arith.constant 0 : index
    %c0_6 = arith.constant 0 : index
    %35 = vector.load %arg4[%c0_5, %c0_6] : memref<128x256xbf16, #tpu.memory_space<vmem>>, vector<128x256xbf16>
    %cst_7 = arith.constant dense<0.000000e+00> : vector<16x256xf32>
    %36 = tpu.matmul %32, %35, %cst_7 {dimension_numbers = #tpu.dot_dimension_numbers<[1], [0], [0], [1], [0, 0, 1, 1], [], []>} : vector<16x128xbf16>, vector<128x256xbf16>, vector<16x256xf32> -> vector<16x256xf32>
    %37 = arith.addf %34, %36 : vector<16x256xf32>
    %c0_8 = arith.constant 0 : index
    %c0_9 = arith.constant 0 : index
    %38 = vector.load %arg5[%c0_8, %c0_9] : memref<16x256xf32, #tpu.memory_space<vmem>>, vector<16x256xf32>
    tpu.vector_store %arg5[%c0_8, %c0_9], %37 {strides = array<i32>} : memref<16x256xf32, #tpu.memory_space<vmem>>, vector<16x256xf32>,
    return
  }
  func.func @transform_0(%arg0: i32) -> (i32, i32) {
    %c0_i32 = arith.constant 0 : i32
    %c0_i32_0 = arith.constant 0 : i32
    return %arg0, %c0_i32 : i32, i32
  }
  func.func @transform_1(%arg0: i32) -> (i32, i32) {
    %c0_i32 = arith.constant 0 : i32
    %c0_i32_0 = arith.constant 0 : i32
    return %arg0, %c0_i32 : i32, i32
  }
  func.func @transform_2(%arg0: i32) -> (i32, i32) {
    %c0_i32 = arith.constant 0 : i32
    %c0_i32_0 = arith.constant 0 : i32
    %c0_i32_1 = arith.constant 0 : i32
    return %c0_i32, %c0_i32_0 : i32, i32
  }
  func.func @transform_3(%arg0: i32) -> (i32, i32) {
    %c0_i32 = arith.constant 0 : i32
    %c0_i32_0 = arith.constant 0 : i32
    %c0_i32_1 = arith.constant 0 : i32
    return %c0_i32, %c0_i32_0 : i32, i32
  }
  func.func @transform_4(%arg0: i32) -> (i32, i32) {
    %c0_i32 = arith.constant 0 : i32
    %c0_i32_0 = arith.constant 0 : i32
    return %arg0, %c0_i32 : i32, i32
  }
}

</mosaic_0001>

<llo_original>
// kernel: tpu_custom_call.1
$region0: #{tpu_custom_call.1}
  #allocation0 [shape = 'u32[]', space=smem, size = 0x4, offset = 0x4, fixed_abs, tag = 'smem constant byte address 0x4 - core index']
  #allocation1 [shape = 'u32[72,128]{1,0:T(1,128)}', space=vmem, size = 0x9000, scoped, tag = 'internal scratch']
  %s0 = inlined_call_operand.vmem [shape: s32[16,1], index: 0, kind: input, shape index: {}]
  %s1 = inlined_call_operand.vmem [shape: s32[16,4], index: 1, kind: input, shape index: {}]
  %s2 = inlined_call_operand.hbm [shape: bf16[128,256], index: 2, kind: input, shape index: {}]
  %s3 = inlined_call_operand.hbm [shape: bf16[128,256], index: 3, kind: input, shape index: {}]
  %s4 = inlined_call_operand.hbm [shape: f32[16,256], index: 4, kind: output, shape index: {}]
  %s5 = sld [smem:[#allocation0]]
  $region34: #{tpu_custom_call.1} parent=0
    _
  %s7 = ssub.s32 1, %s5
  %s8 = scalar_select 0, %s7, %s5
  $region1: #{tpu_custom_call.1} parent=0
    #allocation2 [shape = 'u8[65536]{0}', space=vmem, size = 0x10000, scoped, tag = 'input window, operand 2, single buffered']
    #allocation3 [shape = 's32[1]{0}', space=sflag, size = 0x4, scoped, tag = 'scoped memory for tpu_custom_call.1']
    #allocation4 [shape = 's32[1]{0}', space=sflag, size = 0x4, scoped, tag = 'scoped memory for tpu_custom_call.1']
    #allocation5 [shape = 'u8[65536]{0}', space=vmem, size = 0x10000, scoped, tag = 'input window, operand 3, single buffered']
    #allocation6 [shape = 's32[1]{0}', space=sflag, size = 0x4, scoped, tag = 'scoped memory for tpu_custom_call.1']
    #allocation7 [shape = 'u8[16384]{0}', space=vmem, size = 0x4000, scoped, tag = 'output window, operand 0, single buffered']
    %9 = vsyncpa [#allocation3], 0
    %10 = vsyncpa [#allocation6], 0
    %11 = vsyncpa [#allocation4], 0
    // Predicated region
    $region2: #{tpu_custom_call.1} parent=1 // pred_check
      _
    $region3: #{tpu_custom_call.1} parent=1 // pred_check_branch
      %13 = sbr.rel (0) target = $region5
    $region4: #{tpu_custom_call.1} parent=1 // pred_region
      _
    $region5: #{tpu_custom_call.1} parent=1 // pred_fallthru
      _
    // Predicated region
    $region6: #{tpu_custom_call.1} parent=1 // pred_check
      _
    $region7: #{tpu_custom_call.1} parent=1 // pred_check_branch
      %15 = sbr.rel (0) target = $region9
    $region8: #{tpu_custom_call.1} parent=1 // pred_region
      _
    $region9: #{tpu_custom_call.1} parent=1 // pred_fallthru
      _
    // Predicated region
    $region10: #{tpu_custom_call.1} parent=1 // pred_check
      _
    $region11: #{tpu_custom_call.1} parent=1 // pred_check_branch
      %17 = sbr.rel (0) target = $region13
    $region12: #{tpu_custom_call.1} parent=1 // pred_region
      %19 = vsyncadd [#allocation3], 0
      %s20 = sshll.u32 %s2, 4
      %s21 = int_to_ptr.hbm [resolvable:$true] %s20
      %s22 = sshll.u32 [#allocation2], 4
      %s23 = int_to_ptr.vmem [resolvable:$true] %s22
      %28 = dma.hbm_to_vmem [thread:$0]  %s21, 2048, %s23, [#allocation3], 128, 128, 8
    $region13: #{tpu_custom_call.1} parent=1 // pred_fallthru
      _
    // Predicated region
    $region14: #{tpu_custom_call.1} parent=1 // pred_check
      _
    $region15: #{tpu_custom_call.1} parent=1 // pred_check_branch
      %30 = sbr.rel (0) target = $region17
    $region16: #{tpu_custom_call.1} parent=1 // pred_region
      %32 = vsyncadd [#allocation6], 0
      %s33 = sshll.u32 %s3, 4
      %s34 = int_to_ptr.hbm [resolvable:$true] %s33
      %s35 = sshll.u32 [#allocation5], 4
      %s36 = int_to_ptr.vmem [resolvable:$true] %s35
      %41 = dma.hbm_to_vmem [thread:$0]  %s34, 2048, %s36, [#allocation6], 128, 128, 8
    $region17: #{tpu_custom_call.1} parent=1 // pred_fallthru
      _
    // Predicated region
    $region18: #{tpu_custom_call.1} parent=1 // pred_check
      _
    $region19: #{tpu_custom_call.1} parent=1 // pred_check_branch
      %43 = sbr.rel (0) target = $region21
    $region20: #{tpu_custom_call.1} parent=1 // pred_region
      %45 = dma.done [#allocation3], 2048
    $region21: #{tpu_custom_call.1} parent=1 // pred_fallthru
      _
    // Predicated region
    $region22: #{tpu_custom_call.1} parent=1 // pred_check
      _
    $region23: #{tpu_custom_call.1} parent=1 // pred_check_branch
      %47 = sbr.rel (0) target = $region25
    $region24: #{tpu_custom_call.1} parent=1 // pred_region
      %49 = dma.done [#allocation6], 2048
    $region25: #{tpu_custom_call.1} parent=1 // pred_fallthru
      _
    %v50 = vlaneseq
    %v51 = vand.u32 %v50, 127
    %v52 = vld [vmem:[%s0] sm:$0xff]
    %v53 = vld [vmem:[%s0 + $0x8] sm:$0xff]
    %54 = vset.pattern.permute.xlu0 0
    %55 = vperm.xlu0 %54, %v52
    %v56 = vpop.permute.xlu0 %55
    %57 = vset.pattern.permute.xlu0 0
    %58 = vperm.xlu0 %57, %v53
    %v59 = vpop.permute.xlu0 %58
    %vm60 = vcmp.eq.s32.totalorder %v51, %v56
    %vm61 = vcmp.eq.s32.totalorder %v51, %v59
    %v62 = vsel %vm60, 1, 0
    %v63 = vsel %vm61, 1, 0
    %v64 = vcvt.s32.f32 %v62
    %v65 = vcvt.s32.f32 %v63
    %v66 = vpack.c.bf16 %v65, %v64
    %v67 = vld [vmem:[%s1] sm:$0xff]
    %v68 = vld [vmem:[%s1 + $0x8] sm:$0xff]
    %69 = vset.pattern.permute.xlu0 0
    %70 = vperm.xlu0 %69, %v67
    %v71 = vpop.permute.xlu0 %70
    %72 = vset.pattern.permute.xlu0 0
    %73 = vperm.xlu0 %72, %v68
    %v74 = vpop.permute.xlu0 %73
    %vm75 = vcmp.eq.s32.totalorder %v51, %v71
    %vm76 = vcmp.eq.s32.totalorder %v51, %v74
    %v77 = vadd.s32 %v67, 32
    %v78 = vadd.s32 %v68, 32
    %79 = vset.pattern.permute.xlu0 1
    %80 = vperm.xlu0 %79, %v77
    %v81 = vpop.permute.xlu0 %80
    %82 = vset.pattern.permute.xlu0 1
    %83 = vperm.xlu0 %82, %v78
    %v84 = vpop.permute.xlu0 %83
    %vm85 = vcmp.eq.s32.totalorder %v51, %v81
    %vm86 = vcmp.eq.s32.totalorder %v51, %v84
    %vm87 = vmor %vm75, %vm85
    %vm88 = vmor %vm76, %vm86
    %v89 = vadd.s32 %v67, 64
    %v90 = vadd.s32 %v68, 64
    %91 = vset.pattern.permute.xlu0 2
    %92 = vperm.xlu0 %91, %v89
    %v93 = vpop.permute.xlu0 %92
    %94 = vset.pattern.permute.xlu0 2
    %95 = vperm.xlu0 %94, %v90
    %v96 = vpop.permute.xlu0 %95
    %vm97 = vcmp.eq.s32.totalorder %v51, %v93
    %vm98 = vcmp.eq.s32.totalorder %v51, %v96
    %vm99 = vmor %vm87, %vm97
    %vm100 = vmor %vm88, %vm98
    %v101 = vadd.s32 %v67, 96
    %v102 = vadd.s32 %v68, 96
    %103 = vset.pattern.permute.xlu0 3
    %104 = vperm.xlu0 %103, %v101
    %v105 = vpop.permute.xlu0 %104
    %106 = vset.pattern.permute.xlu0 3
    %107 = vperm.xlu0 %106, %v102
    %v108 = vpop.permute.xlu0 %107
    %vm109 = vcmp.eq.s32.totalorder %v51, %v105
    %vm110 = vcmp.eq.s32.totalorder %v51, %v108
    %vm111 = vmor %vm99, %vm109
    %vm112 = vmor %vm100, %vm110
    %v113 = vsel %vm111, 1, 0
    %v114 = vsel %vm112, 1, 0
    %v115 = vcvt.s32.f32 %v113
    %v116 = vcvt.s32.f32 %v114
    %v117 = vpack.c.bf16 %v116, %v115
    %v118 = vld [vmem:[#allocation2] sm:$0xff]
    %v119 = vld [vmem:[#allocation2 + $0x8] sm:$0xff]
    %v120 = vld [vmem:[#allocation2 + $0x10] sm:$0xff]
    %v121 = vld [vmem:[#allocation2 + $0x18] sm:$0xff]
    %v122 = vld [vmem:[#allocation2 + $0x20] sm:$0xff]
    %v123 = vld [vmem:[#allocation2 + $0x28] sm:$0xff]
    %v124 = vld [vmem:[#allocation2 + $0x30] sm:$0xff]
    %v125 = vld [vmem:[#allocation2 + $0x38] sm:$0xff]
    %v126 = vld [vmem:[#allocation2 + $0x40] sm:$0xff]
    %v127 = vld [vmem:[#allocation2 + $0x48] sm:$0xff]
    %v128 = vld [vmem:[#allocation2 + $0x50] sm:$0xff]
    %v129 = vld [vmem:[#allocation2 + $0x58] sm:$0xff]
    %v130 = vld [vmem:[#allocation2 + $0x60] sm:$0xff]
    %v131 = vld [vmem:[#allocation2 + $0x68] sm:$0xff]
    %v132 = vld [vmem:[#allocation2 + $0x70] sm:$0xff]
    %v133 = vld [vmem:[#allocation2 + $0x78] sm:$0xff]
    %v134 = vld [vmem:[#allocation5] sm:$0xff]
    %v135 = vld [vmem:[#allocation5 + $0x8] sm:$0xff]
    %v136 = vld [vmem:[#allocation5 + $0x10] sm:$0xff]
    %v137 = vld [vmem:[#allocation5 + $0x18] sm:$0xff]
    %v138 = vld [vmem:[#allocation5 + $0x20] sm:$0xff]
    %v139 = vld [vmem:[#allocation5 + $0x28] sm:$0xff]
    %v140 = vld [vmem:[#allocation5 + $0x30] sm:$0xff]
    %v141 = vld [vmem:[#allocation5 + $0x38] sm:$0xff]
    %v142 = vld [vmem:[#allocation5 + $0x40] sm:$0xff]
    %v143 = vld [vmem:[#allocation5 + $0x48] sm:$0xff]
    %v144 = vld [vmem:[#allocation5 + $0x50] sm:$0xff]
    %v145 = vld [vmem:[#allocation5 + $0x58] sm:$0xff]
    %v146 = vld [vmem:[#allocation5 + $0x60] sm:$0xff]
    %v147 = vld [vmem:[#allocation5 + $0x68] sm:$0xff]
    %v148 = vld [vmem:[#allocation5 + $0x70] sm:$0xff]
    %v149 = vld [vmem:[#allocation5 + $0x78] sm:$0xff]
    %v166 = vunpack.c.l.b16 %v134
    %v167 = vunpack.c.h.b16 %v134
    %v168 = vunpack.c.l.b16 %v135
    %v169 = vunpack.c.h.b16 %v135
    %v170 = vunpack.c.l.b16 %v136
    %v171 = vunpack.c.h.b16 %v136
    %v172 = vunpack.c.l.b16 %v137
    %v173 = vunpack.c.h.b16 %v137
    %v174 = vunpack.c.l.b16 %v138
    %v175 = vunpack.c.h.b16 %v138
    %v176 = vunpack.c.l.b16 %v139
    %v177 = vunpack.c.h.b16 %v139
    %v178 = vunpack.c.l.b16 %v140
    %v179 = vunpack.c.h.b16 %v140
    %v180 = vunpack.c.l.b16 %v141
    %v181 = vunpack.c.h.b16 %v141
    %v182 = vunpack.c.l.b16 %v142
    %v183 = vunpack.c.h.b16 %v142
    %v184 = vunpack.c.l.b16 %v143
    %v185 = vunpack.c.h.b16 %v143
    %v186 = vunpack.c.l.b16 %v144
    %v187 = vunpack.c.h.b16 %v144
    %v188 = vunpack.c.l.b16 %v145
    %v189 = vunpack.c.h.b16 %v145
    %v190 = vunpack.c.l.b16 %v146
    %v191 = vunpack.c.h.b16 %v146
    %v192 = vunpack.c.l.b16 %v147
    %v193 = vunpack.c.h.b16 %v147
    %v194 = vunpack.c.l.b16 %v148
    %v195 = vunpack.c.h.b16 %v148
    %v196 = vunpack.c.l.b16 %v149
    %v197 = vunpack.c.h.b16 %v149
    %v198 = vpack.c.b16 %v168, %v166
    %v199 = vpack.c.b16 %v169, %v167
    %v200 = vpack.c.b16 %v172, %v170
    %v201 = vpack.c.b16 %v173, %v171
    %v202 = vpack.c.b16 %v176, %v174
    %v203 = vpack.c.b16 %v177, %v175
    %v204 = vpack.c.b16 %v180, %v178
    %v205 = vpack.c.b16 %v181, %v179
    %v206 = vpack.c.b16 %v184, %v182
    %v207 = vpack.c.b16 %v185, %v183
    %v208 = vpack.c.b16 %v188, %v186
    %v209 = vpack.c.b16 %v189, %v187
    %v210 = vpack.c.b16 %v192, %v190
    %v211 = vpack.c.b16 %v193, %v191
    %v212 = vpack.c.b16 %v196, %v194
    %v213 = vpack.c.b16 %v197, %v195
    %230 = vmatpush.bf16.msra.mxu0 %v212
    %231 = vmatpush.bf16.msra.mxu0 %v210
    %232 = vmatpush.bf16.msra.mxu0 %v208
    %233 = vmatpush.bf16.msra.mxu0 %v206
    %234 = vmatpush.bf16.msra.mxu0 %v204
    %235 = vmatpush.bf16.msra.mxu0 %v202
    %236 = vmatpush.bf16.msra.mxu0 %v200
    %237 = vmatpush.bf16.msra.mxu0 %v198
    %238 = vmatmul.bf16.gmra.mxu0 %v117
    %v239 = vpop.f32.mrf.mxu0
    %v240 = vadd.f32 0.0, %v239
    %v241 = vpop.f32.mrf.mxu0
    %v242 = vadd.f32 0.0, %v241
    %243 = vdwg.mxu0
    %244 = vmatpush.bf16.msra.mxu0 %v213
    %245 = vmatpush.bf16.msra.mxu0 %v211
    %246 = vmatpush.bf16.msra.mxu0 %v209
    %247 = vmatpush.bf16.msra.mxu0 %v207
    %248 = vmatpush.bf16.msra.mxu0 %v205
    %249 = vmatpush.bf16.msra.mxu0 %v203
    %250 = vmatpush.bf16.msra.mxu0 %v201
    %251 = vmatpush.bf16.msra.mxu0 %v199
    %252 = vmatmul.bf16.gmra.mxu0 %v117
    %v253 = vpop.f32.mrf.mxu0
    %v254 = vadd.f32 0.0, %v253
    %v255 = vpop.f32.mrf.mxu0
    %v256 = vadd.f32 0.0, %v255
    %257 = vdwg.mxu0
    %v274 = vunpack.c.l.b16 %v118
    %v275 = vunpack.c.h.b16 %v118
    %v276 = vunpack.c.l.b16 %v119
    %v277 = vunpack.c.h.b16 %v119
    %v278 = vunpack.c.l.b16 %v120
    %v279 = vunpack.c.h.b16 %v120
    %v280 = vunpack.c.l.b16 %v121
    %v281 = vunpack.c.h.b16 %v121
    %v282 = vunpack.c.l.b16 %v122
    %v283 = vunpack.c.h.b16 %v122
    %v284 = vunpack.c.l.b16 %v123
    %v285 = vunpack.c.h.b16 %v123
    %v286 = vunpack.c.l.b16 %v124
    %v287 = vunpack.c.h.b16 %v124
    %v288 = vunpack.c.l.b16 %v125
    %v289 = vunpack.c.h.b16 %v125
    %v290 = vunpack.c.l.b16 %v126
    %v291 = vunpack.c.h.b16 %v126
    %v292 = vunpack.c.l.b16 %v127
    %v293 = vunpack.c.h.b16 %v127
    %v294 = vunpack.c.l.b16 %v128
    %v295 = vunpack.c.h.b16 %v128
    %v296 = vunpack.c.l.b16 %v129
    %v297 = vunpack.c.h.b16 %v129
    %v298 = vunpack.c.l.b16 %v130
    %v299 = vunpack.c.h.b16 %v130
    %v300 = vunpack.c.l.b16 %v131
    %v301 = vunpack.c.h.b16 %v131
    %v302 = vunpack.c.l.b16 %v132
    %v303 = vunpack.c.h.b16 %v132
    %v304 = vunpack.c.l.b16 %v133
    %v305 = vunpack.c.h.b16 %v133
    %v306 = vpack.c.b16 %v276, %v274
    %v307 = vpack.c.b16 %v277, %v275
    %v308 = vpack.c.b16 %v280, %v278
    %v309 = vpack.c.b16 %v281, %v279
    %v310 = vpack.c.b16 %v284, %v282
    %v311 = vpack.c.b16 %v285, %v283
    %v312 = vpack.c.b16 %v288, %v286
    %v313 = vpack.c.b16 %v289, %v287
    %v314 = vpack.c.b16 %v292, %v290
    %v315 = vpack.c.b16 %v293, %v291
    %v316 = vpack.c.b16 %v296, %v294
    %v317 = vpack.c.b16 %v297, %v295
    %v318 = vpack.c.b16 %v300, %v298
    %v319 = vpack.c.b16 %v301, %v299
    %v320 = vpack.c.b16 %v304, %v302
    %v321 = vpack.c.b16 %v305, %v303
    %338 = vmatpush.bf16.msra.mxu0 %v320
    %339 = vmatpush.bf16.msra.mxu0 %v318
    %340 = vmatpush.bf16.msra.mxu0 %v316
    %341 = vmatpush.bf16.msra.mxu0 %v314
    %342 = vmatpush.bf16.msra.mxu0 %v312
    %343 = vmatpush.bf16.msra.mxu0 %v310
    %344 = vmatpush.bf16.msra.mxu0 %v308
    %345 = vmatpush.bf16.msra.mxu0 %v306
    %346 = vmatmul.bf16.gmra.mxu0 %v66
    %v347 = vpop.f32.mrf.mxu0
    %v348 = vadd.f32 %v240, %v347
    %v349 = vpop.f32.mrf.mxu0
    %v350 = vadd.f32 %v242, %v349
    %351 = vdwg.mxu0
    %352 = vmatpush.bf16.msra.mxu0 %v321
    %353 = vmatpush.bf16.msra.mxu0 %v319
    %354 = vmatpush.bf16.msra.mxu0 %v317
    %355 = vmatpush.bf16.msra.mxu0 %v315
    %356 = vmatpush.bf16.msra.mxu0 %v313
    %357 = vmatpush.bf16.msra.mxu0 %v311
    %358 = vmatpush.bf16.msra.mxu0 %v309
    %359 = vmatpush.bf16.msra.mxu0 %v307
    %360 = vmatmul.bf16.gmra.mxu0 %v66
    %v361 = vpop.f32.mrf.mxu0
    %v362 = vadd.f32 %v254, %v361
    %v363 = vpop.f32.mrf.mxu0
    %v364 = vadd.f32 %v256, %v363
    %365 = vdwg.mxu0
    %366 = vst [vmem:[#allocation7] sm:$0xff] %v348
    %367 = vst [vmem:[#allocation7 + $0x8] sm:$0xff] %v362
    %368 = vst [vmem:[#allocation7 + $0x10] sm:$0xff] %v350
    %369 = vst [vmem:[#allocation7 + $0x18] sm:$0xff] %v364
    // Predicated region
    $region26: #{tpu_custom_call.1} parent=1 // pred_check
      _
    $region27: #{tpu_custom_call.1} parent=1 // pred_check_branch
      %371 = sbr.rel (0) target = $region29
    $region28: #{tpu_custom_call.1} parent=1 // pred_region
      %373 = vsyncadd [#allocation4], 0
      %s374 = sshll.u32 [#allocation7], 4
      %s375 = int_to_ptr.vmem [resolvable:$true] %s374
      %s376 = sshll.u32 %s4, 4
      %s377 = int_to_ptr.hbm [resolvable:$true] %s376
      %382 = dma.vmem_to_hbm [thread:$0]  %s375, 512, %s377, [#allocation4], 256, 256, 16
    $region29: #{tpu_custom_call.1} parent=1 // pred_fallthru
      _
    // Predicated region
    $region30: #{tpu_custom_call.1} parent=1 // pred_check
      _
    $region31: #{tpu_custom_call.1} parent=1 // pred_check_branch
      %384 = sbr.rel (0) target = $region33
    $region32: #{tpu_custom_call.1} parent=1 // pred_region
      %386 = dma.done [#allocation4], 512
    $region33: #{tpu_custom_call.1} parent=1 // pred_fallthru
      _
    %387 = vsyncpa [#allocation3], 1
    %388 = vsyncpa [#allocation6], 1
    %389 = vsyncpa [#allocation4], 1

</llo_original>
